<compile_context>
chip_gen: v6e
topology: v6e:2x2x1
jax: 0.10.0
libtpu: 0.0.40
codegen_flags: <defaults>
</compile_context>

<pallas_src>
import jax
import jax.numpy as jnp
from jax import lax
from jax.experimental import pallas as pl
from jax.experimental.pallas import tpu as pltpu


def ffm_pair_kernel(idx_ref, w_ref, out_ref):
    # idx_ref: (F*TB, 1) int32 — field-major per tile: row f*TB + g = idx[g, f]
    # w_ref:   (V_pad, F*D) f32 — w_ref[v, t*D:(t+1)*D] = embedding table t, row v
    # out_ref: (TB, OUT_LANES) f32 — pair products (pair-major), zero-padded lanes
    V_pad, FD = w_ref.shape
    rows = idx_ref.shape[0]
    TB = out_ref.shape[0]
    F = rows // TB
    D = FD // F
    P = F * (F - 1) // 2
    pairs = [(i, j) for i in range(F - 1) for j in range(i + 1, F)]

    # --- Batched one-hot gather on the (otherwise idle) MXU -----------------
    # onehot[r, v] = 1.0 iff v == idx_ref[r]; (F*TB, V_pad) @ (V_pad, F*D).
    lane_v = lax.broadcasted_iota(jnp.int32, (rows, V_pad), 1)
    onehot = (lane_v == idx_ref[...]).astype(jnp.float32)
    gath = jnp.dot(onehot, w_ref[...], preferred_element_type=jnp.float32)
    # gath[f*TB + g, t*D:(t+1)*D] = W[t, idx[g, f], :]

    # --- Pairwise products, whole tile at once ------------------------------
    # Pair (i, j): table_j(field i's feature) * table_i(field j's feature).
    prods = [
        gath[i * TB:(i + 1) * TB, j * D:(j + 1) * D]
        * gath[j * TB:(j + 1) * TB, i * D:(i + 1) * D]
        for (i, j) in pairs
    ]  # P chunks of (TB, D)
    pad = out_ref.shape[1] - P * D
    if pad > 0:
        prods.append(jnp.zeros((TB, pad), jnp.float32))
    # Single lane-dense (TB, OUT_LANES) store per tile.
    out_ref[...] = jnp.concatenate(prods, axis=1)


def ffm_interaction(x, offsets, weights, *, batch_tile=32):
    """x: (B, F) int; offsets: (F,) int; weights: (F, V, D) f32 -> (B, P, D) f32."""
    B, F = x.shape
    Ft, V, D = weights.shape
    assert Ft == F, "weights must have one table per field"
    P = F * (F - 1) // 2
    TB = min(batch_tile, B)
    assert B % TB == 0, "batch must be a multiple of the batch tile"
    assert (F * TB) % 8 == 0 and (F * D) % 128 == 0, "toy alignment assumptions"

    V_pad = -(-V // 128) * 128            # one-hot K dim, lane-aligned
    out_lanes = -(-(P * D) // 128) * 128  # lane-dense, 128-aligned output rows

    # Fold offsets; rearrange field-major within each batch tile so the kernel's
    # gathered rows are contiguous per field: row t*(F*TB) + f*TB + g = idx[t*TB+g, f].
    idx = x.astype(jnp.int32) + offsets.astype(jnp.int32)[None, :]
    idx_r = idx.reshape(B // TB, TB, F).transpose(0, 2, 1).reshape(B * F, 1)

    # Flatten tables table-major along lanes: w_flat[v, t*D:(t+1)*D] = weights[t, v, :].
    w_flat = jnp.transpose(weights.astype(jnp.float32), (1, 0, 2)).reshape(V, F * D)
    w_flat = jnp.pad(w_flat, ((0, V_pad - V), (0, 0)))

    out_flat = pl.pallas_call(
        ffm_pair_kernel,
        out_shape=jax.ShapeDtypeStruct((B, out_lanes), jnp.float32),
        grid_spec=pltpu.PrefetchScalarGridSpec(
            num_scalar_prefetch=0,
            grid=(B // TB,),
            in_specs=[
                pl.BlockSpec((F * TB, 1), lambda i: (i, 0)),       # per-tile indices
                pl.BlockSpec((V_pad, F * D), lambda i: (0, 0)),    # pinned weight
            ],
            out_specs=pl.BlockSpec((TB, out_lanes), lambda i: (i, 0)),
        ),
        compiler_params=pltpu.CompilerParams(
            dimension_semantics=("parallel",),  # shard batch tiles on v7x megacore
        ),
    )(idx_r, w_flat)

    return out_flat[:, : P * D].reshape(B, P, D)


if __name__ == "__main__":
    key = jax.random.PRNGKey(0)

    # Small FFM configuration.
    field_dims = [3, 4, 5, 6]            # per-field vocab sizes
    F = len(field_dims)                  # num_fields = 4
    V = sum(field_dims)                  # total_field_dims = 18
    D = 32                               # embed_dim
    B = 64                               # batch
    P = F * (F - 1) // 2                 # number of field pairs = 6

    # offsets = cumulative start of each field in the shared embedding table.
    offsets = jnp.array(
        [0] + list(jnp.cumsum(jnp.array(field_dims))[:-1]), dtype=jnp.int32
    )

    # Deterministic init (xavier_uniform_ per table, matching the PyTorch module).
    k_w, k_x = jax.random.split(key)
    bound = (6.0 / (V + D)) ** 0.5
    weights = jax.random.uniform(k_w, (F, V, D), jnp.float32, -bound, bound)

    # Input indices: x[:, f] in [0, field_dims[f]).
    keys = jax.random.split(k_x, F)
    cols = [
        jax.random.randint(keys[f], (B, 1), 0, field_dims[f], jnp.int32)
        for f in range(F)
    ]
    x = jnp.concatenate(cols, axis=1)    # (B, F) int32

    out = ffm_interaction(x, offsets, weights)
    out = jax.block_until_ready(out)

    # Pure-JAX reference (mirrors the PyTorch forward).
    idx = x + offsets[None, :]
    w_f = [jnp.take(weights[t], idx, axis=0) for t in range(F)]     # each (B, F, D)
    ref = jnp.stack(
        [w_f[j][:, i] * w_f[i][:, j]
         for i in range(F - 1) for j in range(i + 1, F)],
        axis=1,
    )                                                                # (B, P, D)

    assert out.shape == (B, P, D)
    assert jnp.allclose(out, ref, atol=1e-5), (out, ref)

    print("KERNEL_OK")
</pallas_src>

<mosaic_0001>
module attributes {stable_mosaic.version = 11 : i64} {
  func.func @ffm_pair_kernel(%arg0: i32, %arg1: memref<128x1xi32, #tpu.memory_space<vmem>>, %arg2: memref<128x128xf32, #tpu.memory_space<vmem>>, %arg3: memref<32x256xf32, #tpu.memory_space<vmem>>) attributes {dimension_semantics = [#tpu.dimension_semantics<parallel>], iteration_bounds = array<i64: 2>, scalar_prefetch = 0 : i64, scratch_operands = 0 : i64, tpu.core_type = #tpu.core_type<tc>, window_params = [{transform_indices = @transform_0, window_bounds = array<i64: 128, 1>}, {pipeline_mode = #tpu.pipeline_mode<synchronous>, transform_indices = @transform_1, window_bounds = array<i64: 128, 128>}, {transform_indices = @transform_2, window_bounds = array<i64: 32, 256>}]} {
    %0 = tpu.iota {dimensions = array<i32: 1>} : vector<128x128xi32>
    %c0 = arith.constant 0 : index
    %c0_0 = arith.constant 0 : index
    %1 = vector.load %arg1[%c0, %c0_0] : memref<128x1xi32, #tpu.memory_space<vmem>>, vector<128x1xi32>
    %2 = vector.broadcast %1 : vector<128x1xi32> to vector<128x128xi32>
    %3 = arith.cmpi eq, %0, %2 : vector<128x128xi32>
    %4 = arith.extui %3 : vector<128x128xi1> to vector<128x128xi32>
    %5 = arith.sitofp %4 : vector<128x128xi32> to vector<128x128xf32>
    %c0_1 = arith.constant 0 : index
    %c0_2 = arith.constant 0 : index
    %6 = vector.load %arg2[%c0_1, %c0_2] : memref<128x128xf32, #tpu.memory_space<vmem>>, vector<128x128xf32>
    %cst = arith.constant dense<0.000000e+00> : vector<128x128xf32>
    %7 = tpu.matmul %5, %6, %cst {dimension_numbers = #tpu.dot_dimension_numbers<[1], [0], [0], [1], [0, 0, 1, 1], [], []>} : vector<128x128xf32>, vector<128x128xf32>, vector<128x128xf32> -> vector<128x128xf32>
    %8 = vector.extract_strided_slice %7 {offsets = [0, 32], sizes = [32, 32], strides = [1, 1]} : vector<128x128xf32> to vector<32x32xf32>
    %9 = vector.extract_strided_slice %7 {offsets = [32, 0], sizes = [32, 32], strides = [1, 1]} : vector<128x128xf32> to vector<32x32xf32>
    %10 = arith.mulf %8, %9 : vector<32x32xf32>
    %11 = vector.extract_strided_slice %7 {offsets = [0, 64], sizes = [32, 32], strides = [1, 1]} : vector<128x128xf32> to vector<32x32xf32>
    %12 = vector.extract_strided_slice %7 {offsets = [64, 0], sizes = [32, 32], strides = [1, 1]} : vector<128x128xf32> to vector<32x32xf32>
    %13 = arith.mulf %11, %12 : vector<32x32xf32>
    %14 = vector.extract_strided_slice %7 {offsets = [0, 96], sizes = [32, 32], strides = [1, 1]} : vector<128x128xf32> to vector<32x32xf32>
    %15 = vector.extract_strided_slice %7 {offsets = [96, 0], sizes = [32, 32], strides = [1, 1]} : vector<128x128xf32> to vector<32x32xf32>
    %16 = arith.mulf %14, %15 : vector<32x32xf32>
    %17 = vector.extract_strided_slice %7 {offsets = [32, 64], sizes = [32, 32], strides = [1, 1]} : vector<128x128xf32> to vector<32x32xf32>
    %18 = vector.extract_strided_slice %7 {offsets = [64, 32], sizes = [32, 32], strides = [1, 1]} : vector<128x128xf32> to vector<32x32xf32>
    %19 = arith.mulf %17, %18 : vector<32x32xf32>
    %20 = vector.extract_strided_slice %7 {offsets = [32, 96], sizes = [32, 32], strides = [1, 1]} : vector<128x128xf32> to vector<32x32xf32>
    %21 = vector.extract_strided_slice %7 {offsets = [96, 32], sizes = [32, 32], strides = [1, 1]} : vector<128x128xf32> to vector<32x32xf32>
    %22 = arith.mulf %20, %21 : vector<32x32xf32>
    %23 = vector.extract_strided_slice %7 {offsets = [64, 96], sizes = [32, 32], strides = [1, 1]} : vector<128x128xf32> to vector<32x32xf32>
    %24 = vector.extract_strided_slice %7 {offsets = [96, 64], sizes = [32, 32], strides = [1, 1]} : vector<128x128xf32> to vector<32x32xf32>
    %25 = arith.mulf %23, %24 : vector<32x32xf32>
    %cst_3 = arith.constant 0.000000e+00 : f32
    %26 = vector.broadcast %cst_3 : f32 to vector<32x64xf32>
    %27 = tpu.concatenate %10, %13, %16, %19, %22, %25, %26 in 1 : vector<32x32xf32>, vector<32x32xf32>, vector<32x32xf32>, vector<32x32xf32>, vector<32x32xf32>, vector<32x32xf32>, vector<32x64xf32> -> vector<32x256xf32>
    %c0_4 = arith.constant 0 : index
    %c0_5 = arith.constant 0 : index
    %28 = vector.load %arg3[%c0_4, %c0_5] : memref<32x256xf32, #tpu.memory_space<vmem>>, vector<32x256xf32>
    tpu.vector_store %arg3[%c0_4, %c0_5], %27 {strides = array<i32>} : memref<32x256xf32, #tpu.memory_space<vmem>>, vector<32x256xf32>,
    return
  }
  func.func @transform_0(%arg0: i32) -> (i32, i32) {
    %c0_i32 = arith.constant 0 : i32
    %c0_i32_0 = arith.constant 0 : i32
    return %arg0, %c0_i32 : i32, i32
  }
  func.func @transform_1(%arg0: i32) -> (i32, i32) {
    %c0_i32 = arith.constant 0 : i32
    %c0_i32_0 = arith.constant 0 : i32
    %c0_i32_1 = arith.constant 0 : i32
    return %c0_i32, %c0_i32_0 : i32, i32
  }
  func.func @transform_2(%arg0: i32) -> (i32, i32) {
    %c0_i32 = arith.constant 0 : i32
    %c0_i32_0 = arith.constant 0 : i32
    return %arg0, %c0_i32 : i32, i32
  }
}

</mosaic_0001>

<llo_original>
// kernel: tpu_custom_call.1
$region0: #{tpu_custom_call.1}
  #allocation0 [shape = 'u32[]', space=smem, size = 0x4, offset = 0x4, fixed_abs, tag = 'smem constant byte address 0x4 - core index']
  #allocation1 [shape = 'u32[144,128]{1,0:T(1,128)}', space=vmem, size = 0x12000, scoped, tag = 'internal scratch']
  %s0 = inlined_call_operand.vmem [shape: s32[256,1], index: 0, kind: input, shape index: {}]
  %s1 = inlined_call_operand.vmem [shape: f32[128,128], index: 1, kind: input, shape index: {}]
  %s2 = inlined_call_operand.hbm [shape: f32[64,256], index: 2, kind: output, shape index: {}]
  %s3 = sld [smem:[#allocation0]]
  $region41: #{tpu_custom_call.1} parent=0
    _
  %s5 = ssub.s32 1, %s3
  %s6 = scalar_select 0, %s5, %s3
  $region1: #{tpu_custom_call.1} parent=0
    #allocation2 [shape = 'u8[65536]{0}', space=vmem, size = 0x10000, scoped, tag = 'output window, operand 0']
    #allocation3 [shape = 's32[2]{0}', space=sflag, size = 0x8, scoped, tag = 'scoped memory for tpu_custom_call.1']
    %7 = vsyncpa [#allocation3], 0
    %s8 = scalar_lea.sflag [#allocation3], 1
    %9 = vsyncpa %s8, 0
    loop: start=0, step=1, limit=4
    $region2: #{tpu_custom_call.1} parent=1 // loop_pre_header
      _
    $region3: #{tpu_custom_call.1} parent=1 // loop_header
      %s11 = sphi 0, %s15
      %p12 = scmp.ge.s32.totalorder %s11, 4
      %s21 = sphi 0, %s23
      %s24 = sphi 0, %s21
      %s25 = sphi 0, %s24
      %s41 = sphi 0, %s25
      %s45 = sphi 0, %s45
      %s47 = sphi 0, %s45
      %s48 = sphi 0, %s47
      %s62 = sphi 0, %s48
      %s68 = sphi 0, %s70
      %s71 = sphi 0, %s68
      %s72 = sphi 0, %s71
      %s88 = sphi 0, %s72
    $region4: #{tpu_custom_call.1} parent=1 // loop_header_branch
      %14 = sbr.rel (%p12) target = $region8
    $region5: #{tpu_custom_call.1} parent=1 // loop_body
      %s16 = ssub.s32 %s11, 1
      %s17 = ssub.s32 %s11, 2
      %s18 = sadd.s32 %s11, 1
      %s19 = ssub.s32 %s11, %s18
      %p20 = scmp.eq.s32.totalorder %s19, 0
      %s22 = sadd.s32 %s21, 1
      %s23 = scalar_select %p20, %s21, %s22
      %p26 = pneg %p20
      %p27 = scmp.eq.s32.totalorder %s11, 1
      %p28 = por %p26, %p27
      %p29 = scmp.ne.s32.totalorder %s21, %s24
      %p30 = scmp.eq.s32.totalorder %s11, 0
      %p31 = por %p29, %p30
      %p32 = scmp.ne.s32.totalorder %s21, %s24
      %p33 = scmp.eq.s32.totalorder %s16, 1
      %p34 = por %p32, %p33
      %p35 = scmp.ne.s32.totalorder %s24, %s25
      %p36 = scmp.eq.s32.totalorder %s16, 0
      %p37 = por %p35, %p36
      %p38 = scmp.ne.s32.totalorder %s24, %s25
      %p39 = scmp.eq.s32.totalorder %s17, 1
      %p40 = por %p38, %p39
      %p42 = scmp.ne.s32.totalorder %s25, %s41
      %p43 = scmp.eq.s32.totalorder %s17, 0
      %p44 = por %p42, %p43
      %s46 = sadd.s32 %s45, 1
      %p49 = scmp.eq.s32.totalorder %s11, 1
      %p50 = scmp.ne.s32.totalorder %s45, %s47
      %p51 = scmp.eq.s32.totalorder %s11, 0
      %p52 = por %p50, %p51
      %p53 = scmp.ne.s32.totalorder %s45, %s47
      %p54 = scmp.eq.s32.totalorder %s16, 1
      %p55 = por %p53, %p54
      %p56 = scmp.ne.s32.totalorder %s47, %s48
      %p57 = scmp.eq.s32.totalorder %s16, 0
      %p58 = por %p56, %p57
      %p59 = scmp.ne.s32.totalorder %s47, %s48
      %p60 = scmp.eq.s32.totalorder %s17, 1
      %p61 = por %p59, %p60
      %p63 = scmp.ne.s32.totalorder %s48, %s62
      %p64 = scmp.eq.s32.totalorder %s17, 0
      %p65 = por %p63, %p64
      %s66 = ssub.s32 %s11, %s18
      %p67 = scmp.eq.s32.totalorder %s66, 0
      %s69 = sadd.s32 %s68, 1
      %s70 = scalar_select %p67, %s68, %s69
      %p73 = pneg %p67
      %p74 = scmp.eq.s32.totalorder %s11, 1
      %p75 = por %p73, %p74
      %p76 = scmp.ne.s32.totalorder %s68, %s71
      %p77 = scmp.eq.s32.totalorder %s11, 0
      %p78 = por %p76, %p77
      %p79 = scmp.ne.s32.totalorder %s68, %s71
      %p80 = scmp.eq.s32.totalorder %s16, 1
      %p81 = por %p79, %p80
      %p82 = scmp.ne.s32.totalorder %s71, %s72
      %p83 = scmp.eq.s32.totalorder %s16, 0
      %p84 = por %p82, %p83
      %p85 = scmp.ne.s32.totalorder %s71, %s72
      %p86 = scmp.eq.s32.totalorder %s17, 1
      %p87 = por %p85, %p86
      %p89 = scmp.ne.s32.totalorder %s72, %s88
      %p90 = scmp.eq.s32.totalorder %s17, 0
      %p91 = por %p89, %p90
      %p92 = scmp.le.s32.totalorder 1, %s11
      %p93 = scmp.lt.s32.totalorder %s11, 3
      %p94 = pnand %p92, %p93
      %p95 = pneg %p94
      // Predicated region
      $region9: #{tpu_custom_call.1} parent=5 // pred_check
        _
      $region10: #{tpu_custom_call.1} parent=5 // pred_check_branch
        %97 = sbr.rel (%p94) target = $region12
      $region11: #{tpu_custom_call.1} parent=5 // pred_region
        %s98 = ssub.s32 %s11, 1
        // Predicated region
        $region13: #{tpu_custom_call.1} parent=11 // pred_check
          %p99 = pneg %p58
        $region14: #{tpu_custom_call.1} parent=11 // pred_check_branch
          %101 = sbr.rel (%p99) target = $region16
        $region15: #{tpu_custom_call.1} parent=11 // pred_region
          _
        $region16: #{tpu_custom_call.1} parent=11 // pred_fallthru
          _
      $region12: #{tpu_custom_call.1} parent=5 // pred_fallthru
        _
      %p102 = scmp.lt.s32.totalorder %s11, 2
      // Predicated region
      $region17: #{tpu_custom_call.1} parent=5 // pred_check
        %p103 = pneg %p102
      $region18: #{tpu_custom_call.1} parent=5 // pred_check_branch
        %105 = sbr.rel (%p103) target = $region20
      $region19: #{tpu_custom_call.1} parent=5 // pred_region
        // Predicated region
        $region21: #{tpu_custom_call.1} parent=19 // pred_check
          %p106 = pneg %p31
        $region22: #{tpu_custom_call.1} parent=19 // pred_check_branch
          %108 = sbr.rel (%p106) target = $region24
        $region23: #{tpu_custom_call.1} parent=19 // pred_region
          %s109 = smul.u32 16, %s11
          %p110 = scmp.lt.s32.totalorder %s109, 31
          %s111 = scalar_select %p110, %s109, 31
          %s112 = smul.addr %s111, 8
          %s113 = scalar_lea.vmem %s0, %s112
          %s114 = smul.u32 16, %s11
        $region24: #{tpu_custom_call.1} parent=19 // pred_fallthru
          _
      $region20: #{tpu_custom_call.1} parent=5 // pred_fallthru
        _
      %p115 = scmp.le.s32.totalorder 1, %s11
      %p116 = scmp.lt.s32.totalorder %s11, 3
      %p117 = pnand %p115, %p116
      %p118 = pneg %p117
      // Predicated region
      $region25: #{tpu_custom_call.1} parent=5 // pred_check
        _
      $region26: #{tpu_custom_call.1} parent=5 // pred_check_branch
        %120 = sbr.rel (%p117) target = $region28
      $region27: #{tpu_custom_call.1} parent=5 // pred_region
        %s121 = ssub.s32 %s11, 1
        %s122 = smul.u32 16, %s16
        %p123 = scmp.lt.s32.totalorder %s122, 31
        %s124 = scalar_select %p123, %s122, 31
        %s125 = smul.addr %s124, 8
        %s126 = scalar_lea.vmem %s0, %s125
        %p127 = pneg %p37
        %p128 = pneg %p34
        %p129 = pneg %p58
        %p130 = pneg %p55
        %p131 = pneg %p84
        %p132 = pneg %p81
        %s133 = sand.u32 %s71, 1
        %s134 = scalar_lea.sflag [#allocation3], %s133
        %s135 = sand.u32 %s71, 1
        %s136 = smul.addr %s135, 64
        %s137 = scalar_lea.vmem [#allocation2], %s136
        %s138 = smul.u32 16, %s16
        %p139 = scmp.lt.s32.totalorder %s138, 31
        %s140 = scalar_select %p139, %s138, 31
        %s141 = smul.addr %s140, 8
        %s142 = scalar_lea.vmem %s0, %s141
        %s143 = smul.u32 16, %s16
        %s144 = smul.u32 4, %s16
        %v145 = vlaneseq
        %v146 = vand.u32 %v145, 127
        %v147 = vld [vmem:[%s142] sm:$0xff]
        %v148 = vld [vmem:[%s142 + $0x8] sm:$0xff]
        %v149 = vld [vmem:[%s142 + $0x10] sm:$0xff]
        %v150 = vld [vmem:[%s142 + $0x18] sm:$0xff]
        %v151 = vld [vmem:[%s142 + $0x20] sm:$0xff]
        %v152 = vld [vmem:[%s142 + $0x28] sm:$0xff]
        %v153 = vld [vmem:[%s142 + $0x30] sm:$0xff]
        %v154 = vld [vmem:[%s142 + $0x38] sm:$0xff]
        %v155 = vld [vmem:[%s142 + $0x40] sm:$0xff]
        %v156 = vld [vmem:[%s142 + $0x48] sm:$0xff]
        %v157 = vld [vmem:[%s142 + $0x50] sm:$0xff]
        %v158 = vld [vmem:[%s142 + $0x58] sm:$0xff]
        %v159 = vld [vmem:[%s142 + $0x60] sm:$0xff]
        %v160 = vld [vmem:[%s142 + $0x68] sm:$0xff]
        %v161 = vld [vmem:[%s142 + $0x70] sm:$0xff]
        %v162 = vld [vmem:[%s142 + $0x78] sm:$0xff]
        %163 = vset.pattern.permute.xlu0 0
        %164 = vperm.xlu0 %163, %v147
        %v165 = vpop.permute.xlu0 %164
        %166 = vset.pattern.permute.xlu0 0
        %167 = vperm.xlu0 %166, %v148
        %v168 = vpop.permute.xlu0 %167
        %169 = vset.pattern.permute.xlu0 0
        %170 = vperm.xlu0 %169, %v149
        %v171 = vpop.permute.xlu0 %170
        %172 = vset.pattern.permute.xlu0 0
        %173 = vperm.xlu0 %172, %v150
        %v174 = vpop.permute.xlu0 %173
        %175 = vset.pattern.permute.xlu0 0
        %176 = vperm.xlu0 %175, %v151
        %v177 = vpop.permute.xlu0 %176
        %178 = vset.pattern.permute.xlu0 0
        %179 = vperm.xlu0 %178, %v152
        %v180 = vpop.permute.xlu0 %179
        %181 = vset.pattern.permute.xlu0 0
        %182 = vperm.xlu0 %181, %v153
        %v183 = vpop.permute.xlu0 %182
        %184 = vset.pattern.permute.xlu0 0
        %185 = vperm.xlu0 %184, %v154
        %v186 = vpop.permute.xlu0 %185
        %187 = vset.pattern.permute.xlu0 0
        %188 = vperm.xlu0 %187, %v155
        %v189 = vpop.permute.xlu0 %188
        %190 = vset.pattern.permute.xlu0 0
        %191 = vperm.xlu0 %190, %v156
        %v192 = vpop.permute.xlu0 %191
        %193 = vset.pattern.permute.xlu0 0
        %194 = vperm.xlu0 %193, %v157
        %v195 = vpop.permute.xlu0 %194
        %196 = vset.pattern.permute.xlu0 0
        %197 = vperm.xlu0 %196, %v158
        %v198 = vpop.permute.xlu0 %197
        %199 = vset.pattern.permute.xlu0 0
        %200 = vperm.xlu0 %199, %v159
        %v201 = vpop.permute.xlu0 %200
        %202 = vset.pattern.permute.xlu0 0
        %203 = vperm.xlu0 %202, %v160
        %v204 = vpop.permute.xlu0 %203
        %205 = vset.pattern.permute.xlu0 0
        %206 = vperm.xlu0 %205, %v161
        %v207 = vpop.permute.xlu0 %206
        %208 = vset.pattern.permute.xlu0 0
        %209 = vperm.xlu0 %208, %v162
        %v210 = vpop.permute.xlu0 %209
        %vm211 = vcmp.eq.s32.totalorder %v146, %v165
        %vm212 = vcmp.eq.s32.totalorder %v146, %v168
        %vm213 = vcmp.eq.s32.totalorder %v146, %v171
        %vm214 = vcmp.eq.s32.totalorder %v146, %v174
        %vm215 = vcmp.eq.s32.totalorder %v146, %v177
        %vm216 = vcmp.eq.s32.totalorder %v146, %v180
        %vm217 = vcmp.eq.s32.totalorder %v146, %v183
        %vm218 = vcmp.eq.s32.totalorder %v146, %v186
        %vm219 = vcmp.eq.s32.totalorder %v146, %v189
        %vm220 = vcmp.eq.s32.totalorder %v146, %v192
        %vm221 = vcmp.eq.s32.totalorder %v146, %v195
        %vm222 = vcmp.eq.s32.totalorder %v146, %v198
        %vm223 = vcmp.eq.s32.totalorder %v146, %v201
        %vm224 = vcmp.eq.s32.totalorder %v146, %v204
        %vm225 = vcmp.eq.s32.totalorder %v146, %v207
        %vm226 = vcmp.eq.s32.totalorder %v146, %v210
        %v227 = vsel %vm211, 1, 0
        %v228 = vsel %vm212, 1, 0
        %v229 = vsel %vm213, 1, 0
        %v230 = vsel %vm214, 1, 0
        %v231 = vsel %vm215, 1, 0
        %v232 = vsel %vm216, 1, 0
        %v233 = vsel %vm217, 1, 0
        %v234 = vsel %vm218, 1, 0
        %v235 = vsel %vm219, 1, 0
        %v236 = vsel %vm220, 1, 0
        %v237 = vsel %vm221, 1, 0
        %v238 = vsel %vm222, 1, 0
        %v239 = vsel %vm223, 1, 0
        %v240 = vsel %vm224, 1, 0
        %v241 = vsel %vm225, 1, 0
        %v242 = vsel %vm226, 1, 0
        %v243 = vcvt.s32.f32 %v227
        %v244 = vcvt.s32.f32 %v228
        %v245 = vcvt.s32.f32 %v229
        %v246 = vcvt.s32.f32 %v230
        %v247 = vcvt.s32.f32 %v231
        %v248 = vcvt.s32.f32 %v232
        %v249 = vcvt.s32.f32 %v233
        %v250 = vcvt.s32.f32 %v234
        %v251 = vcvt.s32.f32 %v235
        %v252 = vcvt.s32.f32 %v236
        %v253 = vcvt.s32.f32 %v237
        %v254 = vcvt.s32.f32 %v238
        %v255 = vcvt.s32.f32 %v239
        %v256 = vcvt.s32.f32 %v240
        %v257 = vcvt.s32.f32 %v241
        %v258 = vcvt.s32.f32 %v242
        %v259 = vld [vmem:[%s1] sm:$0xff]
        %v260 = vld [vmem:[%s1 + $0x8] sm:$0xff]
        %v261 = vld [vmem:[%s1 + $0x10] sm:$0xff]
        %v262 = vld [vmem:[%s1 + $0x18] sm:$0xff]
        %v263 = vld [vmem:[%s1 + $0x20] sm:$0xff]
        %v264 = vld [vmem:[%s1 + $0x28] sm:$0xff]
        %v265 = vld [vmem:[%s1 + $0x30] sm:$0xff]
        %v266 = vld [vmem:[%s1 + $0x38] sm:$0xff]
        %v267 = vld [vmem:[%s1 + $0x40] sm:$0xff]
        %v268 = vld [vmem:[%s1 + $0x48] sm:$0xff]
        %v269 = vld [vmem:[%s1 + $0x50] sm:$0xff]
        %v270 = vld [vmem:[%s1 + $0x58] sm:$0xff]
        %v271 = vld [vmem:[%s1 + $0x60] sm:$0xff]
        %v272 = vld [vmem:[%s1 + $0x68] sm:$0xff]
        %v273 = vld [vmem:[%s1 + $0x70] sm:$0xff]
        %v274 = vld [vmem:[%s1 + $0x78] sm:$0xff]
        %275 = vmatprep.subr.mxu0 0.0
        %276 = vmatpush1.msra.mxu0 %v274
        %277 = vmatprep.subr.mxu0 0.0
        %278 = vmatpush1.msra.mxu0 %v273
        %279 = vmatprep.subr.mxu0 0.0
        %280 = vmatpush1.msra.mxu0 %v272
        %281 = vmatprep.subr.mxu0 0.0
        %282 = vmatpush1.msra.mxu0 %v271
        %283 = vmatprep.subr.mxu0 0.0
        %284 = vmatpush1.msra.mxu0 %v270
        %285 = vmatprep.subr.mxu0 0.0
        %286 = vmatpush1.msra.mxu0 %v269
        %287 = vmatprep.subr.mxu0 0.0
        %288 = vmatpush1.msra.mxu0 %v268
        %289 = vmatprep.subr.mxu0 0.0
        %290 = vmatpush1.msra.mxu0 %v267
        %291 = vmatprep.subr.mxu0 0.0
        %292 = vmatpush1.msra.mxu0 %v266
        %293 = vmatprep.subr.mxu0 0.0
        %294 = vmatpush1.msra.mxu0 %v265
        %295 = vmatprep.subr.mxu0 0.0
        %296 = vmatpush1.msra.mxu0 %v264
        %297 = vmatprep.subr.mxu0 0.0
        %298 = vmatpush1.msra.mxu0 %v263
        %299 = vmatprep.subr.mxu0 0.0
        %300 = vmatpush1.msra.mxu0 %v262
        %301 = vmatprep.subr.mxu0 0.0
        %302 = vmatpush1.msra.mxu0 %v261
        %303 = vmatprep.subr.mxu0 0.0
        %304 = vmatpush1.msra.mxu0 %v260
        %305 = vmatprep.subr.mxu0 0.0
        %306 = vmatpush1.msra.mxu0 %v259
        %307 = vmatprep.subr.mxu0 0.0
        %308 = vmatpush2.msra.mxu0 0.0
        %309 = vmatprep.subr.mxu0 0.0
        %310 = vmatpush2.msra.mxu0 0.0
        %311 = vmatprep.subr.mxu0 0.0
        %312 = vmatpush2.msra.mxu0 0.0
        %313 = vmatprep.subr.mxu0 0.0
        %314 = vmatpush2.msra.mxu0 0.0
        %315 = vmatprep.subr.mxu0 0.0
        %316 = vmatpush2.msra.mxu0 0.0
        %317 = vmatprep.subr.mxu0 0.0
        %318 = vmatpush2.msra.mxu0 0.0
        %319 = vmatprep.subr.mxu0 0.0
        %320 = vmatpush2.msra.mxu0 0.0
        %321 = vmatprep.subr.mxu0 0.0
        %322 = vmatpush2.msra.mxu0 0.0
        %323 = vmatprep.subr.mxu0 0.0
        %324 = vmatpush2.msra.mxu0 0.0
        %325 = vmatprep.subr.mxu0 0.0
        %326 = vmatpush2.msra.mxu0 0.0
        %327 = vmatprep.subr.mxu0 0.0
        %328 = vmatpush2.msra.mxu0 0.0
        %329 = vmatprep.subr.mxu0 0.0
        %330 = vmatpush2.msra.mxu0 0.0
        %331 = vmatprep.subr.mxu0 0.0
        %332 = vmatpush2.msra.mxu0 0.0
        %333 = vmatprep.subr.mxu0 0.0
        %334 = vmatpush2.msra.mxu0 0.0
        %335 = vmatprep.subr.mxu0 0.0
        %336 = vmatpush2.msra.mxu0 0.0
        %337 = vmatprep.subr.mxu0 0.0
        %338 = vmatpush2.msra.mxu0 0.0
        %339 = vmatprep.mubr.f32.mxu0 0.0
        %340 = vmatmul.mubr.f32.gmra.mxu0 %v243
        %v341 = vpop.f32.mrf.mxu0
        %v342 = vadd.f32 0.0, %v341
        %v343 = vpop.f32.mrf.mxu0
        %344 = vmatprep.mubr.f32.mxu0 0.0
        %345 = vmatmul.mubr.f32.gmra.mxu0 %v244
        %v346 = vpop.f32.mrf.mxu0
        %v347 = vadd.f32 0.0, %v346
        %v348 = vpop.f32.mrf.mxu0
        %349 = vmatprep.mubr.f32.mxu0 0.0
        %350 = vmatmul.mubr.f32.gmra.mxu0 %v245
        %v351 = vpop.f32.mrf.mxu0
        %v352 = vadd.f32 0.0, %v351
        %v353 = vpop.f32.mrf.mxu0
        %354 = vmatprep.mubr.f32.mxu0 0.0
        %355 = vmatmul.mubr.f32.gmra.mxu0 %v246
        %v356 = vpop.f32.mrf.mxu0
        %v357 = vadd.f32 0.0, %v356
        %v358 = vpop.f32.mrf.mxu0
        %359 = vmatprep.mubr.f32.mxu0 0.0
        %360 = vmatmul.mubr.f32.gmra.mxu0 %v247
        %v361 = vpop.f32.mrf.mxu0
        %v362 = vadd.f32 0.0, %v361
        %v363 = vpop.f32.mrf.mxu0
        %364 = vmatprep.mubr.f32.mxu0 0.0
        %365 = vmatmul.mubr.f32.gmra.mxu0 %v248
        %v366 = vpop.f32.mrf.mxu0
        %v367 = vadd.f32 0.0, %v366
        %v368 = vpop.f32.mrf.mxu0
        %369 = vmatprep.mubr.f32.mxu0 0.0
        %370 = vmatmul.mubr.f32.gmra.mxu0 %v249
        %v371 = vpop.f32.mrf.mxu0
        %v372 = vadd.f32 0.0, %v371
        %v373 = vpop.f32.mrf.mxu0
        %374 = vmatprep.mubr.f32.mxu0 0.0
        %375 = vmatmul.mubr.f32.gmra.mxu0 %v250
        %v376 = vpop.f32.mrf.mxu0
        %v377 = vadd.f32 0.0, %v376
        %v378 = vpop.f32.mrf.mxu0
        %379 = vmatprep.mubr.f32.mxu0 0.0
        %380 = vmatmul.mubr.f32.gmra.mxu0 %v251
        %v381 = vpop.f32.mrf.mxu0
        %v382 = vadd.f32 0.0, %v381
        %v383 = vpop.f32.mrf.mxu0
        %384 = vmatprep.mubr.f32.mxu0 0.0
        %385 = vmatmul.mubr.f32.gmra.mxu0 %v252
        %v386 = vpop.f32.mrf.mxu0
        %v387 = vadd.f32 0.0, %v386
        %v388 = vpop.f32.mrf.mxu0
        %389 = vmatprep.mubr.f32.mxu0 0.0
        %390 = vmatmul.mubr.f32.gmra.mxu0 %v253
        %v391 = vpop.f32.mrf.mxu0
        %v392 = vadd.f32 0.0, %v391
        %v393 = vpop.f32.mrf.mxu0
        %394 = vmatprep.mubr.f32.mxu0 0.0
        %395 = vmatmul.mubr.f32.gmra.mxu0 %v254
        %v396 = vpop.f32.mrf.mxu0
        %v397 = vadd.f32 0.0, %v396
        %v398 = vpop.f32.mrf.mxu0
        %399 = vmatprep.mubr.f32.mxu0 0.0
        %400 = vmatmul.mubr.f32.gmra.mxu0 %v255
        %v401 = vpop.f32.mrf.mxu0
        %v402 = vadd.f32 0.0, %v401
        %v403 = vpop.f32.mrf.mxu0
        %404 = vmatprep.mubr.f32.mxu0 0.0
        %405 = vmatmul.mubr.f32.gmra.mxu0 %v256
        %v406 = vpop.f32.mrf.mxu0
        %v407 = vadd.f32 0.0, %v406
        %v408 = vpop.f32.mrf.mxu0
        %409 = vmatprep.mubr.f32.mxu0 0.0
        %410 = vmatmul.mubr.f32.gmra.mxu0 %v257
        %v411 = vpop.f32.mrf.mxu0
        %v412 = vadd.f32 0.0, %v411
        %v413 = vpop.f32.mrf.mxu0
        %414 = vmatprep.mubr.f32.mxu0 0.0
        %415 = vmatmul.mubr.f32.gmra.mxu0 %v258
        %v416 = vpop.f32.mrf.mxu0
        %v417 = vadd.f32 0.0, %v416
        %v418 = vpop.f32.mrf.mxu0
        %419 = vdwg.mxu0
        %424 = vrot.lane.b32.xlu0 %v362, 32
        %v425 = vpop.permute.xlu0 %424
        %426 = vrot.lane.b32.xlu0 %v367, 32
        %v427 = vpop.permute.xlu0 %426
        %428 = vrot.lane.b32.xlu0 %v372, 32
        %v429 = vpop.permute.xlu0 %428
        %430 = vrot.lane.b32.xlu0 %v377, 32
        %v431 = vpop.permute.xlu0 %430
        %v436 = vmul.f32 %v342, %v425
        %v437 = vmul.f32 %v347, %v427
        %v438 = vmul.f32 %v352, %v429
        %v439 = vmul.f32 %v357, %v431
        %444 = vrot.lane.b32.xlu0 %v382, 64
        %v445 = vpop.permute.xlu0 %444
        %446 = vrot.lane.b32.xlu0 %v387, 64
        %v447 = vpop.permute.xlu0 %446
        %448 = vrot.lane.b32.xlu0 %v392, 64
        %v449 = vpop.permute.xlu0 %448
        %450 = vrot.lane.b32.xlu0 %v397, 64
        %v451 = vpop.permute.xlu0 %450
        %v456 = vmul.f32 %v342, %v445
        %v457 = vmul.f32 %v347, %v447
        %v458 = vmul.f32 %v352, %v449
        %v459 = vmul.f32 %v357, %v451
        %464 = vrot.lane.b32.xlu0 %v402, 96
        %v465 = vpop.permute.xlu0 %464
        %466 = vrot.lane.b32.xlu0 %v407, 96
        %v467 = vpop.permute.xlu0 %466
        %468 = vrot.lane.b32.xlu0 %v412, 96
        %v469 = vpop.permute.xlu0 %468
        %470 = vrot.lane.b32.xlu0 %v417, 96
        %v471 = vpop.permute.xlu0 %470
        %v476 = vmul.f32 %v342, %v465
        %v477 = vmul.f32 %v347, %v467
        %v478 = vmul.f32 %v352, %v469
        %v479 = vmul.f32 %v357, %v471
        %480 = vrot.lane.b32.xlu0 %v382, 32
        %v481 = vpop.permute.xlu0 %480
        %482 = vrot.lane.b32.xlu0 %v387, 32
        %v483 = vpop.permute.xlu0 %482
        %484 = vrot.lane.b32.xlu0 %v392, 32
        %v485 = vpop.permute.xlu0 %484
        %486 = vrot.lane.b32.xlu0 %v397, 32
        %v487 = vpop.permute.xlu0 %486
        %v492 = vmul.f32 %v362, %v481
        %v493 = vmul.f32 %v367, %v483
        %v494 = vmul.f32 %v372, %v485
        %v495 = vmul.f32 %v377, %v487
        %496 = vrot.lane.b32.xlu0 %v402, 64
        %v497 = vpop.permute.xlu0 %496
        %498 = vrot.lane.b32.xlu0 %v407, 64
        %v499 = vpop.permute.xlu0 %498
        %500 = vrot.lane.b32.xlu0 %v412, 64
        %v501 = vpop.permute.xlu0 %500
        %502 = vrot.lane.b32.xlu0 %v417, 64
        %v503 = vpop.permute.xlu0 %502
        %v508 = vmul.f32 %v362, %v497
        %v509 = vmul.f32 %v367, %v499
        %v510 = vmul.f32 %v372, %v501
        %v511 = vmul.f32 %v377, %v503
        %512 = vrot.lane.b32.xlu0 %v402, 32
        %v513 = vpop.permute.xlu0 %512
        %514 = vrot.lane.b32.xlu0 %v407, 32
        %v515 = vpop.permute.xlu0 %514
        %516 = vrot.lane.b32.xlu0 %v412, 32
        %v517 = vpop.permute.xlu0 %516
        %518 = vrot.lane.b32.xlu0 %v417, 32
        %v519 = vpop.permute.xlu0 %518
        %v524 = vmul.f32 %v382, %v513
        %v525 = vmul.f32 %v387, %v515
        %v526 = vmul.f32 %v392, %v517
        %v527 = vmul.f32 %v397, %v519
        %532 = vrot.lane.b32.xlu0 %v436, 96
        %v533 = vpop.permute.xlu0 %532
        %534 = vrot.lane.b32.xlu0 %v437, 96
        %v535 = vpop.permute.xlu0 %534
        %536 = vrot.lane.b32.xlu0 %v438, 96
        %v537 = vpop.permute.xlu0 %536
        %538 = vrot.lane.b32.xlu0 %v439, 96
        %v539 = vpop.permute.xlu0 %538
        %548 = vrot.lane.b32.xlu0 %v456, 96
        %v549 = vpop.permute.xlu0 %548
        %550 = vrot.lane.b32.xlu0 %v457, 96
        %v551 = vpop.permute.xlu0 %550
        %552 = vrot.lane.b32.xlu0 %v458, 96
        %v553 = vpop.permute.xlu0 %552
        %554 = vrot.lane.b32.xlu0 %v459, 96
        %v555 = vpop.permute.xlu0 %554
        %564 = vrot.lane.b32.xlu0 %v476, 96
        %v565 = vpop.permute.xlu0 %564
        %566 = vrot.lane.b32.xlu0 %v477, 96
        %v567 = vpop.permute.xlu0 %566
        %568 = vrot.lane.b32.xlu0 %v478, 96
        %v569 = vpop.permute.xlu0 %568
        %570 = vrot.lane.b32.xlu0 %v479, 96
        %v571 = vpop.permute.xlu0 %570
        %580 = vrot.lane.b32.xlu0 %v492, 32
        %v581 = vpop.permute.xlu0 %580
        %582 = vrot.lane.b32.xlu0 %v493, 32
        %v583 = vpop.permute.xlu0 %582
        %584 = vrot.lane.b32.xlu0 %v494, 32
        %v585 = vpop.permute.xlu0 %584
        %586 = vrot.lane.b32.xlu0 %v495, 32
        %v587 = vpop.permute.xlu0 %586
        %596 = vrot.lane.b32.xlu0 %v508, 32
        %v597 = vpop.permute.xlu0 %596
        %598 = vrot.lane.b32.xlu0 %v509, 32
        %v599 = vpop.permute.xlu0 %598
        %600 = vrot.lane.b32.xlu0 %v510, 32
        %v601 = vpop.permute.xlu0 %600
        %602 = vrot.lane.b32.xlu0 %v511, 32
        %v603 = vpop.permute.xlu0 %602
        %612 = vrot.lane.b32.xlu0 %v524, 64
        %v613 = vpop.permute.xlu0 %612
        %614 = vrot.lane.b32.xlu0 %v525, 64
        %v615 = vpop.permute.xlu0 %614
        %616 = vrot.lane.b32.xlu0 %v526, 64
        %v617 = vpop.permute.xlu0 %616
        %618 = vrot.lane.b32.xlu0 %v527, 64
        %v619 = vpop.permute.xlu0 %618
        %vm624 = vcmask 261120
        %v625 = vsel %vm624, %v533, %v549
        %v626 = vsel %vm624, %v535, %v551
        %v627 = vsel %vm624, %v537, %v553
        %v628 = vsel %vm624, %v539, %v555
        %vm629 = vcmask 523264
        %v630 = vsel %vm629, %v625, %v565
        %v631 = vsel %vm629, %v626, %v567
        %v632 = vsel %vm629, %v627, %v569
        %v633 = vsel %vm629, %v628, %v571
        %vm634 = vcmask 785408
        %v635 = vsel %vm634, %v630, %v581
        %v636 = vsel %vm634, %v631, %v583
        %v637 = vsel %vm634, %v632, %v585
        %v638 = vsel %vm634, %v633, %v587
        %v639 = vsel %vm624, %v597, %v613
        %v640 = vsel %vm624, %v599, %v615
        %v641 = vsel %vm624, %v601, %v617
        %v642 = vsel %vm624, %v603, %v619
        %v643 = vsel %vm629, %v639, 0.0
        %v644 = vsel %vm629, %v640, 0.0
        %v645 = vsel %vm629, %v641, 0.0
        %v646 = vsel %vm629, %v642, 0.0
        %647 = vst [vmem:[%s137] sm:$0xff] %v635
        %648 = vst [vmem:[%s137 + $0x8] sm:$0xff] %v643
        %649 = vst [vmem:[%s137 + $0x10] sm:$0xff] %v636
        %650 = vst [vmem:[%s137 + $0x18] sm:$0xff] %v644
        %651 = vst [vmem:[%s137 + $0x20] sm:$0xff] %v637
        %652 = vst [vmem:[%s137 + $0x28] sm:$0xff] %v645
        %653 = vst [vmem:[%s137 + $0x30] sm:$0xff] %v638
        %654 = vst [vmem:[%s137 + $0x38] sm:$0xff] %v646
        %s655 = sand.u32 %s71, 1
        %s656 = scalar_lea.sflag [#allocation3], %s655
        %s657 = sand.u32 %s71, 1
        %s658 = smul.addr %s657, 64
        %s659 = scalar_lea.vmem [#allocation2], %s658
        // Predicated region
        $region29: #{tpu_custom_call.1} parent=27 // pred_check
          %p660 = pneg %p81
        $region30: #{tpu_custom_call.1} parent=27 // pred_check_branch
          %662 = sbr.rel (%p660) target = $region32
        $region31: #{tpu_custom_call.1} parent=27 // pred_region
          %s663 = smul.u32 4, %s16
          %s665 = ssub.s32 1024, 1024
          %666 = vsyncadd %s656, %s665
          %s667 = smul.addr %s663, 2
          %s668 = smul.addr %s667, 128
          %s669 = scalar_lea.hbm %s2, %s668
          %s670 = sshll.u32 %s659, 4
          %s671 = int_to_ptr.vmem [resolvable:$true] %s670
          %676 = dma.vmem_to_hbm [thread:$0]  %s671, 1024, %s669, %s656, 256, 256, 16
        $region32: #{tpu_custom_call.1} parent=27 // pred_fallthru
          _
      $region28: #{tpu_custom_call.1} parent=5 // pred_fallthru
        _
      %p677 = scmp.le.s32.totalorder 2, %s11
      // Predicated region
      $region33: #{tpu_custom_call.1} parent=5 // pred_check
        %p678 = pneg %p677
      $region34: #{tpu_custom_call.1} parent=5 // pred_check_branch
        %680 = sbr.rel (%p678) target = $region36
      $region35: #{tpu_custom_call.1} parent=5 // pred_region
        %s681 = ssub.s32 %s11, 2
        // Predicated region
        $region37: #{tpu_custom_call.1} parent=35 // pred_check
          %p682 = pneg %p87
        $region38: #{tpu_custom_call.1} parent=35 // pred_check_branch
          %684 = sbr.rel (%p682) target = $region40
        $region39: #{tpu_custom_call.1} parent=35 // pred_region
          %s685 = sand.u32 %s72, 1
          %s686 = scalar_lea.sflag [#allocation3], %s685
          %s687 = sand.u32 %s72, 1
          %s688 = smul.addr %s687, 64
          %s689 = scalar_lea.vmem [#allocation2], %s688
          %690 = dma.done %s686, 1024
        $region40: #{tpu_custom_call.1} parent=35 // pred_fallthru
          _
      $region36: #{tpu_custom_call.1} parent=5 // pred_fallthru
        _
    $region6: #{tpu_custom_call.1} parent=1 // loop_footer
      %s15 = sadd.s32 1, %s11
    $region7: #{tpu_custom_call.1} parent=1 // loop_footer_branch
      %10 = sbr.rel target = $region3
    $region8: #{tpu_custom_call.1} parent=1 // loop_exit
      _
    %691 = vsyncpa [#allocation3], 1
    %s692 = scalar_lea.sflag [#allocation3], 1
    %693 = vsyncpa %s692, 1

</llo_original>
